<compile_context>
chip_gen: v6e
topology: v6e:2x2x1
jax: 0.10.0
libtpu: 0.0.40
codegen_flags: <defaults>
</compile_context>

<pallas_src>
import jax
import jax.numpy as jnp
from jax.experimental import pallas as pl
from jax.experimental.pallas import tpu as pltpu


def _model_kernel(ids_ref,      # VMEM [TB, S]     int32
                  emb_ref,      # VMEM [VPAD, H]   f32   (zero-padded vocab rows)
                  w_ref,        # VMEM [H, LPAD]   f32   (zero-padded head weight)
                  b_ref,        # VMEM [1, LPAD]   f32   (zero-padded head bias)
                  labels_ref,   # VMEM [TB, 1]     f32
                  prob_ref,     # VMEM [TB, LPAD]  f32   out: sigmoid(logits), padded
                  loglik_ref):  # VMEM [TB, 1]     f32   out: per-example log-likelihood
    tb, s_len = ids_ref.shape
    vpad = emb_ref.shape[0]

    ids = ids_ref[...]                                            # [TB, S] int32

    # Masked bag-of-tokens counts: counts[b, v] = #{s : ids[b,s] == v and v != pad(1)}.
    # Built as S cheap [TB, VPAD] VPU compare/adds (S is tiny and static here).
    v_iota = jax.lax.broadcasted_iota(jnp.int32, (tb, vpad), 1)   # [TB, VPAD] (hoisted)
    counts = jnp.zeros((tb, vpad), jnp.float32)
    for s in range(s_len):
        tok = ids[:, s:s + 1]                                     # [TB, 1] lane-broadcast
        hit = jnp.logical_and(v_iota == tok, tok != 1)            # pad token id == 1
        counts = counts + hit.astype(jnp.float32)

    # Non-pad token count per example (each non-pad token contributes exactly 1).
    cnt = jnp.sum(counts, axis=-1, keepdims=True)                 # [TB, 1]

    # Fused embedding gather + masked sum over the sequence: one MXU matmul.
    summed = jnp.dot(counts, emb_ref[...],
                     preferred_element_type=jnp.float32)          # [TB, H]
    pooled = summed / jnp.maximum(cnt, 1.0)                       # exact masked mean

    # Linear head (lane-dense, 128-wide padded) + sigmoid.
    logits = jnp.dot(pooled, w_ref[...],
                     preferred_element_type=jnp.float32) + b_ref[...]   # [TB, LPAD]
    prob = jax.nn.sigmoid(logits)
    prob_ref[...] = prob.astype(prob_ref.dtype)

    # Per-example BCE log-likelihood on class column 0 (mean / negate done in JAX,
    # so grid tiles stay fully independent -> "parallel" semantics stay legal).
    y = labels_ref[...]                                           # [TB, 1]
    p0 = prob[:, 0:1]                                             # [TB, 1]
    loglik_ref[...] = (jnp.log(p0 + 1e-10) * y
                       + jnp.log(1.0 - p0 + 1e-10) * (1.0 - y))


def model_forward(input_ids, labels, emb_table, w, b, *, batch_tile=256):
    """Mirrors Model.forward(input_ids, labels) -> (loss, prob)."""
    B, S = input_ids.shape
    V, H = emb_table.shape
    L = w.shape[1]
    LPAD = 128
    VPAD = max(128, ((V + 127) // 128) * 128)

    # Batch tile: single grid step for small B; <=256 rows per step otherwise.
    # The batch axis is "parallel" so multiple tiles shard across v7x's 2 TCs.
    TB = min(batch_tile, B)
    assert B % TB == 0, "batch must be divisible by the batch tile"
    assert TB == B or TB % 8 == 0, "partial batch tiles must be sublane-aligned"
    G = B // TB

    # Tiny parameter prep: pad vocab and head so every kernel matmul/store is
    # lane-dense (full 128-wide contraction / unmasked vst).
    f32 = jnp.float32
    emb_pad = jnp.zeros((VPAD, H), f32).at[:V, :].set(emb_table.astype(f32))
    w_pad = jnp.zeros((H, LPAD), f32).at[:, :L].set(w.astype(f32))
    b_pad = jnp.zeros((1, LPAD), f32).at[0, :L].set(b.astype(f32))
    labels_2d = labels.astype(f32).reshape(B, 1)
    ids_i32 = input_ids.astype(jnp.int32)

    grid_spec = pltpu.PrefetchScalarGridSpec(
        num_scalar_prefetch=0,
        grid=(G,),
        in_specs=[
            pl.BlockSpec((TB, S), lambda i: (i, 0)),          # token ids
            pl.BlockSpec((VPAD, H), lambda i: (0, 0)),        # padded embedding table
            pl.BlockSpec((H, LPAD), lambda i: (0, 0)),        # padded head weight
            pl.BlockSpec((1, LPAD), lambda i: (0, 0)),        # padded head bias
            pl.BlockSpec((TB, 1), lambda i: (i, 0)),          # labels
        ],
        out_specs=(
            pl.BlockSpec((TB, LPAD), lambda i: (i, 0)),       # prob (padded, lane-dense)
            pl.BlockSpec((TB, 1), lambda i: (i, 0)),          # per-example loglik
        ),
    )

    prob_pad, loglik = pl.pallas_call(
        _model_kernel,
        out_shape=(
            jax.ShapeDtypeStruct((B, LPAD), jnp.float32),
            jax.ShapeDtypeStruct((B, 1), jnp.float32),
        ),
        grid_spec=grid_spec,
        compiler_params=pltpu.CompilerParams(
            dimension_semantics=("parallel",),                # independent batch tiles
        ),
    )(ids_i32, emb_pad, w_pad, b_pad, labels_2d)

    prob = prob_pad[:, :L]
    loss = -jnp.mean(loglik)
    return loss, prob


if __name__ == "__main__":
    # Small deterministic setup consistent with the module's forward:
    # batch=16, seq=8, hidden=128, vocab=64, num_labels=2.
    B, S, H, V, L = 16, 8, 128, 64, 2

    key = jax.random.PRNGKey(0)
    k_emb, k_w, k_b, k_ids, k_lab = jax.random.split(key, 5)

    emb_table = jax.random.normal(k_emb, (V, H), dtype=jnp.float32) * 0.02
    w = jax.random.normal(k_w, (H, L), dtype=jnp.float32) * 0.1
    b = jax.random.normal(k_b, (L,), dtype=jnp.float32) * 0.1

    input_ids = jax.random.randint(k_ids, (B, S), 0, V, dtype=jnp.int32)
    input_ids = input_ids.at[:, -2:].set(1)           # force some pad tokens (id == 1)
    labels = jax.random.randint(k_lab, (B,), 0, 2, dtype=jnp.int32)

    fwd = jax.jit(model_forward)
    loss, prob = fwd(input_ids, labels, emb_table, w, b)
    jax.block_until_ready((loss, prob))

    # Pure-JAX reference of the same forward semantics.
    mask_ref = (input_ids != 1).astype(jnp.float32)
    x_ref = emb_table[input_ids]
    pooled_ref = (x_ref * mask_ref[:, :, None]).sum(1) / jnp.maximum(
        mask_ref.sum(1, keepdims=True), 1.0)
    logits_ref = pooled_ref @ w + b
    prob_ref = jax.nn.sigmoid(logits_ref)
    y = labels.astype(jnp.float32)
    loss_ref = -jnp.mean(jnp.log(prob_ref[:, 0] + 1e-10) * y
                         + jnp.log(1.0 - prob_ref[:, 0] + 1e-10) * (1.0 - y))

    assert jnp.allclose(prob, prob_ref, atol=2e-3), (prob, prob_ref)
    assert jnp.allclose(loss, loss_ref, atol=2e-3), (loss, loss_ref)

    print("KERNEL_OK")
</pallas_src>

<mosaic_0001>
module attributes {stable_mosaic.version = 11 : i64} {
  func.func @_model_kernel(%arg0: i32, %arg1: memref<16x8xi32, #tpu.memory_space<vmem>>, %arg2: memref<128x128xf32, #tpu.memory_space<vmem>>, %arg3: memref<128x128xf32, #tpu.memory_space<vmem>>, %arg4: memref<1x128xf32, #tpu.memory_space<vmem>>, %arg5: memref<16x1xf32, #tpu.memory_space<vmem>>, %arg6: memref<16x128xf32, #tpu.memory_space<vmem>>, %arg7: memref<16x1xf32, #tpu.memory_space<vmem>>) attributes {dimension_semantics = [#tpu.dimension_semantics<parallel>], iteration_bounds = array<i64: 1>, scalar_prefetch = 0 : i64, scratch_operands = 0 : i64, tpu.core_type = #tpu.core_type<tc>, window_params = [{transform_indices = @transform_0, window_bounds = array<i64: 16, 8>}, {pipeline_mode = #tpu.pipeline_mode<synchronous>, transform_indices = @transform_1, window_bounds = array<i64: 128, 128>}, {pipeline_mode = #tpu.pipeline_mode<synchronous>, transform_indices = @transform_2, window_bounds = array<i64: 128, 128>}, {pipeline_mode = #tpu.pipeline_mode<synchronous>, transform_indices = @transform_3, window_bounds = array<i64: 1, 128>}, {transform_indices = @transform_4, window_bounds = array<i64: 16, 1>}, {transform_indices = @transform_5, window_bounds = array<i64: 16, 128>}, {transform_indices = @transform_6, window_bounds = array<i64: 16, 1>}]} {
    %c0 = arith.constant 0 : index
    %c0_0 = arith.constant 0 : index
    %0 = vector.load %arg1[%c0, %c0_0] : memref<16x8xi32, #tpu.memory_space<vmem>>, vector<16x8xi32>
    %1 = tpu.iota {dimensions = array<i32: 1>} : vector<16x128xi32>
    %cst = arith.constant 0.000000e+00 : f32
    %2 = vector.broadcast %cst : f32 to vector<16x128xf32>
    %3 = vector.extract_strided_slice %0 {offsets = [0, 0], sizes = [16, 1], strides = [1, 1]} : vector<16x8xi32> to vector<16x1xi32>
    %4 = vector.broadcast %3 : vector<16x1xi32> to vector<16x128xi32>
    %5 = arith.cmpi eq, %1, %4 : vector<16x128xi32>
    %c1_i32 = arith.constant 1 : i32
    %6 = vector.broadcast %c1_i32 : i32 to vector<16x1xi32>
    %7 = arith.cmpi ne, %3, %6 : vector<16x1xi32>
    %8 = vector.broadcast %7 : vector<16x1xi1> to vector<16x128xi1>
    %9 = arith.andi %5, %8 : vector<16x128xi1>
    %10 = arith.extui %9 : vector<16x128xi1> to vector<16x128xi32>
    %11 = arith.sitofp %10 : vector<16x128xi32> to vector<16x128xf32>
    %12 = arith.addf %2, %11 : vector<16x128xf32>
    %13 = vector.extract_strided_slice %0 {offsets = [0, 1], sizes = [16, 1], strides = [1, 1]} : vector<16x8xi32> to vector<16x1xi32>
    %14 = vector.broadcast %13 : vector<16x1xi32> to vector<16x128xi32>
    %15 = arith.cmpi eq, %1, %14 : vector<16x128xi32>
    %c1_i32_1 = arith.constant 1 : i32
    %16 = vector.broadcast %c1_i32_1 : i32 to vector<16x1xi32>
    %17 = arith.cmpi ne, %13, %16 : vector<16x1xi32>
    %18 = vector.broadcast %17 : vector<16x1xi1> to vector<16x128xi1>
    %19 = arith.andi %15, %18 : vector<16x128xi1>
    %20 = arith.extui %19 : vector<16x128xi1> to vector<16x128xi32>
    %21 = arith.sitofp %20 : vector<16x128xi32> to vector<16x128xf32>
    %22 = arith.addf %12, %21 : vector<16x128xf32>
    %23 = vector.extract_strided_slice %0 {offsets = [0, 2], sizes = [16, 1], strides = [1, 1]} : vector<16x8xi32> to vector<16x1xi32>
    %24 = vector.broadcast %23 : vector<16x1xi32> to vector<16x128xi32>
    %25 = arith.cmpi eq, %1, %24 : vector<16x128xi32>
    %c1_i32_2 = arith.constant 1 : i32
    %26 = vector.broadcast %c1_i32_2 : i32 to vector<16x1xi32>
    %27 = arith.cmpi ne, %23, %26 : vector<16x1xi32>
    %28 = vector.broadcast %27 : vector<16x1xi1> to vector<16x128xi1>
    %29 = arith.andi %25, %28 : vector<16x128xi1>
    %30 = arith.extui %29 : vector<16x128xi1> to vector<16x128xi32>
    %31 = arith.sitofp %30 : vector<16x128xi32> to vector<16x128xf32>
    %32 = arith.addf %22, %31 : vector<16x128xf32>
    %33 = vector.extract_strided_slice %0 {offsets = [0, 3], sizes = [16, 1], strides = [1, 1]} : vector<16x8xi32> to vector<16x1xi32>
    %34 = vector.broadcast %33 : vector<16x1xi32> to vector<16x128xi32>
    %35 = arith.cmpi eq, %1, %34 : vector<16x128xi32>
    %c1_i32_3 = arith.constant 1 : i32
    %36 = vector.broadcast %c1_i32_3 : i32 to vector<16x1xi32>
    %37 = arith.cmpi ne, %33, %36 : vector<16x1xi32>
    %38 = vector.broadcast %37 : vector<16x1xi1> to vector<16x128xi1>
    %39 = arith.andi %35, %38 : vector<16x128xi1>
    %40 = arith.extui %39 : vector<16x128xi1> to vector<16x128xi32>
    %41 = arith.sitofp %40 : vector<16x128xi32> to vector<16x128xf32>
    %42 = arith.addf %32, %41 : vector<16x128xf32>
    %43 = vector.extract_strided_slice %0 {offsets = [0, 4], sizes = [16, 1], strides = [1, 1]} : vector<16x8xi32> to vector<16x1xi32>
    %44 = vector.broadcast %43 : vector<16x1xi32> to vector<16x128xi32>
    %45 = arith.cmpi eq, %1, %44 : vector<16x128xi32>
    %c1_i32_4 = arith.constant 1 : i32
    %46 = vector.broadcast %c1_i32_4 : i32 to vector<16x1xi32>
    %47 = arith.cmpi ne, %43, %46 : vector<16x1xi32>
    %48 = vector.broadcast %47 : vector<16x1xi1> to vector<16x128xi1>
    %49 = arith.andi %45, %48 : vector<16x128xi1>
    %50 = arith.extui %49 : vector<16x128xi1> to vector<16x128xi32>
    %51 = arith.sitofp %50 : vector<16x128xi32> to vector<16x128xf32>
    %52 = arith.addf %42, %51 : vector<16x128xf32>
    %53 = vector.extract_strided_slice %0 {offsets = [0, 5], sizes = [16, 1], strides = [1, 1]} : vector<16x8xi32> to vector<16x1xi32>
    %54 = vector.broadcast %53 : vector<16x1xi32> to vector<16x128xi32>
    %55 = arith.cmpi eq, %1, %54 : vector<16x128xi32>
    %c1_i32_5 = arith.constant 1 : i32
    %56 = vector.broadcast %c1_i32_5 : i32 to vector<16x1xi32>
    %57 = arith.cmpi ne, %53, %56 : vector<16x1xi32>
    %58 = vector.broadcast %57 : vector<16x1xi1> to vector<16x128xi1>
    %59 = arith.andi %55, %58 : vector<16x128xi1>
    %60 = arith.extui %59 : vector<16x128xi1> to vector<16x128xi32>
    %61 = arith.sitofp %60 : vector<16x128xi32> to vector<16x128xf32>
    %62 = arith.addf %52, %61 : vector<16x128xf32>
    %63 = vector.extract_strided_slice %0 {offsets = [0, 6], sizes = [16, 1], strides = [1, 1]} : vector<16x8xi32> to vector<16x1xi32>
    %64 = vector.broadcast %63 : vector<16x1xi32> to vector<16x128xi32>
    %65 = arith.cmpi eq, %1, %64 : vector<16x128xi32>
    %c1_i32_6 = arith.constant 1 : i32
    %66 = vector.broadcast %c1_i32_6 : i32 to vector<16x1xi32>
    %67 = arith.cmpi ne, %63, %66 : vector<16x1xi32>
    %68 = vector.broadcast %67 : vector<16x1xi1> to vector<16x128xi1>
    %69 = arith.andi %65, %68 : vector<16x128xi1>
    %70 = arith.extui %69 : vector<16x128xi1> to vector<16x128xi32>
    %71 = arith.sitofp %70 : vector<16x128xi32> to vector<16x128xf32>
    %72 = arith.addf %62, %71 : vector<16x128xf32>
    %73 = vector.extract_strided_slice %0 {offsets = [0, 7], sizes = [16, 1], strides = [1, 1]} : vector<16x8xi32> to vector<16x1xi32>
    %74 = vector.broadcast %73 : vector<16x1xi32> to vector<16x128xi32>
    %75 = arith.cmpi eq, %1, %74 : vector<16x128xi32>
    %c1_i32_7 = arith.constant 1 : i32
    %76 = vector.broadcast %c1_i32_7 : i32 to vector<16x1xi32>
    %77 = arith.cmpi ne, %73, %76 : vector<16x1xi32>
    %78 = vector.broadcast %77 : vector<16x1xi1> to vector<16x128xi1>
    %79 = arith.andi %75, %78 : vector<16x128xi1>
    %80 = arith.extui %79 : vector<16x128xi1> to vector<16x128xi32>
    %81 = arith.sitofp %80 : vector<16x128xi32> to vector<16x128xf32>
    %82 = arith.addf %72, %81 : vector<16x128xf32>
    %cst_8 = arith.constant dense<0.000000e+00> : vector<16xf32>
    %83 = vector.multi_reduction <add>, %82, %cst_8 [1] : vector<16x128xf32> to vector<16xf32>
    %84 = vector.shape_cast %83 : vector<16xf32> to vector<16x1xf32>
    %c0_9 = arith.constant 0 : index
    %c0_10 = arith.constant 0 : index
    %85 = vector.load %arg2[%c0_9, %c0_10] : memref<128x128xf32, #tpu.memory_space<vmem>>, vector<128x128xf32>
    %cst_11 = arith.constant dense<0.000000e+00> : vector<16x128xf32>
    %86 = tpu.matmul %82, %85, %cst_11 {dimension_numbers = #tpu.dot_dimension_numbers<[1], [0], [0], [1], [0, 0, 1, 1], [], []>} : vector<16x128xf32>, vector<128x128xf32>, vector<16x128xf32> -> vector<16x128xf32>
    %cst_12 = arith.constant 1.000000e+00 : f32
    %87 = vector.broadcast %cst_12 : f32 to vector<16x1xf32>
    %88 = arith.maximumf %84, %87 : vector<16x1xf32>
    %89 = vector.broadcast %88 : vector<16x1xf32> to vector<16x128xf32>
    %90 = arith.divf %86, %89 : vector<16x128xf32>
    %c0_13 = arith.constant 0 : index
    %c0_14 = arith.constant 0 : index
    %91 = vector.load %arg3[%c0_13, %c0_14] : memref<128x128xf32, #tpu.memory_space<vmem>>, vector<128x128xf32>
    %cst_15 = arith.constant dense<0.000000e+00> : vector<16x128xf32>
    %92 = tpu.matmul %90, %91, %cst_15 {dimension_numbers = #tpu.dot_dimension_numbers<[1], [0], [0], [1], [0, 0, 1, 1], [], []>} : vector<16x128xf32>, vector<128x128xf32>, vector<16x128xf32> -> vector<16x128xf32>
    %c0_16 = arith.constant 0 : index
    %c0_17 = arith.constant 0 : index
    %93 = vector.load %arg4[%c0_16, %c0_17] : memref<1x128xf32, #tpu.memory_space<vmem>>, vector<1x128xf32>
    %94 = vector.broadcast %93 : vector<1x128xf32> to vector<16x128xf32>
    %95 = arith.addf %92, %94 : vector<16x128xf32>
    %96 = arith.negf %95 : vector<16x128xf32>
    %97 = math.exp %96 : vector<16x128xf32>
    %cst_18 = arith.constant 1.000000e+00 : f32
    %98 = vector.broadcast %cst_18 : f32 to vector<16x128xf32>
    %99 = arith.addf %98, %97 : vector<16x128xf32>
    %100 = arith.divf %98, %99 : vector<16x128xf32>
    %c0_19 = arith.constant 0 : index
    %c0_20 = arith.constant 0 : index
    %101 = vector.load %arg6[%c0_19, %c0_20] : memref<16x128xf32, #tpu.memory_space<vmem>>, vector<16x128xf32>
    tpu.vector_store %arg6[%c0_19, %c0_20], %100 {strides = array<i32>} : memref<16x128xf32, #tpu.memory_space<vmem>>, vector<16x128xf32>,
    %c0_21 = arith.constant 0 : index
    %c0_22 = arith.constant 0 : index
    %102 = vector.load %arg5[%c0_21, %c0_22] : memref<16x1xf32, #tpu.memory_space<vmem>>, vector<16x1xf32>
    %103 = vector.extract_strided_slice %100 {offsets = [0, 0], sizes = [16, 1], strides = [1, 1]} : vector<16x128xf32> to vector<16x1xf32>
    %cst_23 = arith.constant 1.000000e-10 : f32
    %104 = vector.broadcast %cst_23 : f32 to vector<16x1xf32>
    %105 = arith.addf %103, %104 : vector<16x1xf32>
    %106 = math.log %105 : vector<16x1xf32>
    %107 = arith.mulf %106, %102 : vector<16x1xf32>
    %cst_24 = arith.constant 1.000000e+00 : f32
    %108 = vector.broadcast %cst_24 : f32 to vector<16x1xf32>
    %109 = arith.subf %108, %103 : vector<16x1xf32>
    %cst_25 = arith.constant 1.000000e-10 : f32
    %110 = vector.broadcast %cst_25 : f32 to vector<16x1xf32>
    %111 = arith.addf %109, %110 : vector<16x1xf32>
    %112 = math.log %111 : vector<16x1xf32>
    %cst_26 = arith.constant 1.000000e+00 : f32
    %113 = vector.broadcast %cst_26 : f32 to vector<16x1xf32>
    %114 = arith.subf %113, %102 : vector<16x1xf32>
    %115 = arith.mulf %112, %114 : vector<16x1xf32>
    %116 = arith.addf %107, %115 : vector<16x1xf32>
    %c0_27 = arith.constant 0 : index
    %c0_28 = arith.constant 0 : index
    %117 = vector.load %arg7[%c0_27, %c0_28] : memref<16x1xf32, #tpu.memory_space<vmem>>, vector<16x1xf32>
    tpu.vector_store %arg7[%c0_27, %c0_28], %116 {strides = array<i32>} : memref<16x1xf32, #tpu.memory_space<vmem>>, vector<16x1xf32>,
    return
  }
  func.func @transform_0(%arg0: i32) -> (i32, i32) {
    %c0_i32 = arith.constant 0 : i32
    %c0_i32_0 = arith.constant 0 : i32
    return %arg0, %c0_i32 : i32, i32
  }
  func.func @transform_1(%arg0: i32) -> (i32, i32) {
    %c0_i32 = arith.constant 0 : i32
    %c0_i32_0 = arith.constant 0 : i32
    %c0_i32_1 = arith.constant 0 : i32
    return %c0_i32, %c0_i32_0 : i32, i32
  }
  func.func @transform_2(%arg0: i32) -> (i32, i32) {
    %c0_i32 = arith.constant 0 : i32
    %c0_i32_0 = arith.constant 0 : i32
    %c0_i32_1 = arith.constant 0 : i32
    return %c0_i32, %c0_i32_0 : i32, i32
  }
  func.func @transform_3(%arg0: i32) -> (i32, i32) {
    %c0_i32 = arith.constant 0 : i32
    %c0_i32_0 = arith.constant 0 : i32
    %c0_i32_1 = arith.constant 0 : i32
    return %c0_i32, %c0_i32_0 : i32, i32
  }
  func.func @transform_4(%arg0: i32) -> (i32, i32) {
    %c0_i32 = arith.constant 0 : i32
    %c0_i32_0 = arith.constant 0 : i32
    return %arg0, %c0_i32 : i32, i32
  }
  func.func @transform_5(%arg0: i32) -> (i32, i32) {
    %c0_i32 = arith.constant 0 : i32
    %c0_i32_0 = arith.constant 0 : i32
    return %arg0, %c0_i32 : i32, i32
  }
  func.func @transform_6(%arg0: i32) -> (i32, i32) {
    %c0_i32 = arith.constant 0 : i32
    %c0_i32_0 = arith.constant 0 : i32
    return %arg0, %c0_i32 : i32, i32
  }
}

</mosaic_0001>

<llo_original>
// kernel: model_forward.1
$region0: #{model_forward.1}
  #allocation0 [shape = 'u32[]', space=smem, size = 0x4, offset = 0x4, fixed_abs, tag = 'smem constant byte address 0x4 - core index']
  #allocation1 [shape = 'u32[144,128]{1,0:T(1,128)}', space=vmem, size = 0x12000, scoped, tag = 'internal scratch']
  %s0 = inlined_call_operand.vmem [shape: s32[16,8], index: 0, kind: input, shape index: {}]
  %s1 = inlined_call_operand.vmem [shape: f32[128,128], index: 1, kind: input, shape index: {}]
  %s2 = inlined_call_operand.vmem [shape: f32[128,128], index: 2, kind: input, shape index: {}]
  %s3 = inlined_call_operand.vmem [shape: f32[1,128], index: 3, kind: input, shape index: {}]
  %s4 = inlined_call_operand.vmem [shape: f32[16,1], index: 4, kind: input, shape index: {}]
  %s5 = inlined_call_operand.vmem [shape: f32[16,128], index: 5, kind: output, shape index: {0}]
  %s6 = inlined_call_operand.vmem [shape: f32[16,1], index: 6, kind: output, shape index: {1}]
  %7 = xla_tuple %s5, %s6
  %s8 = sld [smem:[#allocation0]]
  $region38: #{model_forward.1} parent=0
    _
  %s10 = ssub.s32 1, %s8
  %s11 = scalar_select 0, %s10, %s8
  // Predicated region
  $region2: #{model_forward.1} parent=0 // pred_check
    _
  $region3: #{model_forward.1} parent=0 // pred_check_branch
    %13 = sbr.rel (0) target = $region5
  $region4: #{model_forward.1} parent=0 // pred_region
    _
  $region5: #{model_forward.1} parent=0 // pred_fallthru
    _
  // Predicated region
  $region6: #{model_forward.1} parent=0 // pred_check
    _
  $region7: #{model_forward.1} parent=0 // pred_check_branch
    %15 = sbr.rel (0) target = $region9
  $region8: #{model_forward.1} parent=0 // pred_region
    _
  $region9: #{model_forward.1} parent=0 // pred_fallthru
    _
  // Predicated region
  $region10: #{model_forward.1} parent=0 // pred_check
    _
  $region11: #{model_forward.1} parent=0 // pred_check_branch
    %17 = sbr.rel (0) target = $region13
  $region12: #{model_forward.1} parent=0 // pred_region
    _
  $region13: #{model_forward.1} parent=0 // pred_fallthru
    _
  // Predicated region
  $region14: #{model_forward.1} parent=0 // pred_check
    _
  $region15: #{model_forward.1} parent=0 // pred_check_branch
    %19 = sbr.rel (0) target = $region17
  $region16: #{model_forward.1} parent=0 // pred_region
    _
  $region17: #{model_forward.1} parent=0 // pred_fallthru
    _
  // Predicated region
  $region18: #{model_forward.1} parent=0 // pred_check
    _
  $region19: #{model_forward.1} parent=0 // pred_check_branch
    %21 = sbr.rel (0) target = $region21
  $region20: #{model_forward.1} parent=0 // pred_region
    _
  $region21: #{model_forward.1} parent=0 // pred_fallthru
    _
  %v22 = vld [vmem:[%s0] sm:$0xff]
  %v23 = vld [vmem:[%s0 + $0x8] sm:$0xff]
  %v24 = vlaneseq
  %v25 = vand.u32 %v24, 127
  %26 = vset.pattern.permute.xlu0 0
  %27 = vperm.xlu0 %26, %v22
  %v28 = vpop.permute.xlu0 %27
  %29 = vset.pattern.permute.xlu0 0
  %30 = vperm.xlu0 %29, %v23
  %v31 = vpop.permute.xlu0 %30
  %vm32 = vcmp.eq.s32.totalorder %v25, %v28
  %vm33 = vcmp.eq.s32.totalorder %v25, %v31
  %vm34 = vcmp.ne.s32.totalorder %v22, 1
  %vm35 = vcmp.ne.s32.totalorder %v23, 1
  %v36 = vsel %vm34, 1, 0
  %v37 = vsel %vm35, 1, 0
  %38 = vset.pattern.permute.xlu0 0
  %39 = vperm.xlu0 %38, %v36
  %v40 = vpop.permute.xlu0 %39
  %41 = vset.pattern.permute.xlu0 0
  %42 = vperm.xlu0 %41, %v37
  %v43 = vpop.permute.xlu0 %42
  %vm44 = vcmp.eq.s32.totalorder %v40, 1
  %vm45 = vcmp.eq.s32.totalorder %v43, 1
  %vm46 = vmand %vm32, %vm44
  %vm47 = vmand %vm33, %vm45
  %v48 = vsel %vm46, 1, 0
  %v49 = vsel %vm47, 1, 0
  %v50 = vcvt.s32.f32 %v48
  %v51 = vcvt.s32.f32 %v49
  %v52 = vadd.f32 %v50, 0.0
  %v53 = vadd.f32 %v51, 0.0
  %54 = vset.pattern.permute.xlu0 1
  %55 = vperm.xlu0 %54, %v22
  %v56 = vpop.permute.xlu0 %55
  %57 = vset.pattern.permute.xlu0 1
  %58 = vperm.xlu0 %57, %v23
  %v59 = vpop.permute.xlu0 %58
  %vm60 = vcmp.eq.s32.totalorder %v25, %v56
  %vm61 = vcmp.eq.s32.totalorder %v25, %v59
  %62 = vset.pattern.permute.xlu0 1
  %63 = vperm.xlu0 %62, %v36
  %v64 = vpop.permute.xlu0 %63
  %65 = vset.pattern.permute.xlu0 1
  %66 = vperm.xlu0 %65, %v37
  %v67 = vpop.permute.xlu0 %66
  %vm68 = vcmp.eq.s32.totalorder %v64, 1
  %vm69 = vcmp.eq.s32.totalorder %v67, 1
  %vm70 = vmand %vm60, %vm68
  %vm71 = vmand %vm61, %vm69
  %v72 = vsel %vm70, 1, 0
  %v73 = vsel %vm71, 1, 0
  %v74 = vcvt.s32.f32 %v72
  %v75 = vcvt.s32.f32 %v73
  %v76 = vadd.f32 %v52, %v74
  %v77 = vadd.f32 %v53, %v75
  %78 = vset.pattern.permute.xlu0 2
  %79 = vperm.xlu0 %78, %v22
  %v80 = vpop.permute.xlu0 %79
  %81 = vset.pattern.permute.xlu0 2
  %82 = vperm.xlu0 %81, %v23
  %v83 = vpop.permute.xlu0 %82
  %vm84 = vcmp.eq.s32.totalorder %v25, %v80
  %vm85 = vcmp.eq.s32.totalorder %v25, %v83
  %86 = vset.pattern.permute.xlu0 2
  %87 = vperm.xlu0 %86, %v36
  %v88 = vpop.permute.xlu0 %87
  %89 = vset.pattern.permute.xlu0 2
  %90 = vperm.xlu0 %89, %v37
  %v91 = vpop.permute.xlu0 %90
  %vm92 = vcmp.eq.s32.totalorder %v88, 1
  %vm93 = vcmp.eq.s32.totalorder %v91, 1
  %vm94 = vmand %vm84, %vm92
  %vm95 = vmand %vm85, %vm93
  %v96 = vsel %vm94, 1, 0
  %v97 = vsel %vm95, 1, 0
  %v98 = vcvt.s32.f32 %v96
  %v99 = vcvt.s32.f32 %v97
  %v100 = vadd.f32 %v76, %v98
  %v101 = vadd.f32 %v77, %v99
  %102 = vset.pattern.permute.xlu0 3
  %103 = vperm.xlu0 %102, %v22
  %v104 = vpop.permute.xlu0 %103
  %105 = vset.pattern.permute.xlu0 3
  %106 = vperm.xlu0 %105, %v23
  %v107 = vpop.permute.xlu0 %106
  %vm108 = vcmp.eq.s32.totalorder %v25, %v104
  %vm109 = vcmp.eq.s32.totalorder %v25, %v107
  %110 = vset.pattern.permute.xlu0 3
  %111 = vperm.xlu0 %110, %v36
  %v112 = vpop.permute.xlu0 %111
  %113 = vset.pattern.permute.xlu0 3
  %114 = vperm.xlu0 %113, %v37
  %v115 = vpop.permute.xlu0 %114
  %vm116 = vcmp.eq.s32.totalorder %v112, 1
  %vm117 = vcmp.eq.s32.totalorder %v115, 1
  %vm118 = vmand %vm108, %vm116
  %vm119 = vmand %vm109, %vm117
  %v120 = vsel %vm118, 1, 0
  %v121 = vsel %vm119, 1, 0
  %v122 = vcvt.s32.f32 %v120
  %v123 = vcvt.s32.f32 %v121
  %v124 = vadd.f32 %v100, %v122
  %v125 = vadd.f32 %v101, %v123
  %126 = vset.pattern.permute.xlu0 4
  %127 = vperm.xlu0 %126, %v22
  %v128 = vpop.permute.xlu0 %127
  %129 = vset.pattern.permute.xlu0 4
  %130 = vperm.xlu0 %129, %v23
  %v131 = vpop.permute.xlu0 %130
  %vm132 = vcmp.eq.s32.totalorder %v25, %v128
  %vm133 = vcmp.eq.s32.totalorder %v25, %v131
  %134 = vset.pattern.permute.xlu0 4
  %135 = vperm.xlu0 %134, %v36
  %v136 = vpop.permute.xlu0 %135
  %137 = vset.pattern.permute.xlu0 4
  %138 = vperm.xlu0 %137, %v37
  %v139 = vpop.permute.xlu0 %138
  %vm140 = vcmp.eq.s32.totalorder %v136, 1
  %vm141 = vcmp.eq.s32.totalorder %v139, 1
  %vm142 = vmand %vm132, %vm140
  %vm143 = vmand %vm133, %vm141
  %v144 = vsel %vm142, 1, 0
  %v145 = vsel %vm143, 1, 0
  %v146 = vcvt.s32.f32 %v144
  %v147 = vcvt.s32.f32 %v145
  %v148 = vadd.f32 %v124, %v146
  %v149 = vadd.f32 %v125, %v147
  %150 = vset.pattern.permute.xlu0 5
  %151 = vperm.xlu0 %150, %v22
  %v152 = vpop.permute.xlu0 %151
  %153 = vset.pattern.permute.xlu0 5
  %154 = vperm.xlu0 %153, %v23
  %v155 = vpop.permute.xlu0 %154
  %vm156 = vcmp.eq.s32.totalorder %v25, %v152
  %vm157 = vcmp.eq.s32.totalorder %v25, %v155
  %158 = vset.pattern.permute.xlu0 5
  %159 = vperm.xlu0 %158, %v36
  %v160 = vpop.permute.xlu0 %159
  %161 = vset.pattern.permute.xlu0 5
  %162 = vperm.xlu0 %161, %v37
  %v163 = vpop.permute.xlu0 %162
  %vm164 = vcmp.eq.s32.totalorder %v160, 1
  %vm165 = vcmp.eq.s32.totalorder %v163, 1
  %vm166 = vmand %vm156, %vm164
  %vm167 = vmand %vm157, %vm165
  %v168 = vsel %vm166, 1, 0
  %v169 = vsel %vm167, 1, 0
  %v170 = vcvt.s32.f32 %v168
  %v171 = vcvt.s32.f32 %v169
  %v172 = vadd.f32 %v148, %v170
  %v173 = vadd.f32 %v149, %v171
  %174 = vset.pattern.permute.xlu0 6
  %175 = vperm.xlu0 %174, %v22
  %v176 = vpop.permute.xlu0 %175
  %177 = vset.pattern.permute.xlu0 6
  %178 = vperm.xlu0 %177, %v23
  %v179 = vpop.permute.xlu0 %178
  %vm180 = vcmp.eq.s32.totalorder %v25, %v176
  %vm181 = vcmp.eq.s32.totalorder %v25, %v179
  %182 = vset.pattern.permute.xlu0 6
  %183 = vperm.xlu0 %182, %v36
  %v184 = vpop.permute.xlu0 %183
  %185 = vset.pattern.permute.xlu0 6
  %186 = vperm.xlu0 %185, %v37
  %v187 = vpop.permute.xlu0 %186
  %vm188 = vcmp.eq.s32.totalorder %v184, 1
  %vm189 = vcmp.eq.s32.totalorder %v187, 1
  %vm190 = vmand %vm180, %vm188
  %vm191 = vmand %vm181, %vm189
  %v192 = vsel %vm190, 1, 0
  %v193 = vsel %vm191, 1, 0
  %v194 = vcvt.s32.f32 %v192
  %v195 = vcvt.s32.f32 %v193
  %v196 = vadd.f32 %v172, %v194
  %v197 = vadd.f32 %v173, %v195
  %198 = vset.pattern.permute.xlu0 7
  %199 = vperm.xlu0 %198, %v22
  %v200 = vpop.permute.xlu0 %199
  %201 = vset.pattern.permute.xlu0 7
  %202 = vperm.xlu0 %201, %v23
  %v203 = vpop.permute.xlu0 %202
  %vm204 = vcmp.eq.s32.totalorder %v25, %v200
  %vm205 = vcmp.eq.s32.totalorder %v25, %v203
  %206 = vset.pattern.permute.xlu0 7
  %207 = vperm.xlu0 %206, %v36
  %v208 = vpop.permute.xlu0 %207
  %209 = vset.pattern.permute.xlu0 7
  %210 = vperm.xlu0 %209, %v37
  %v211 = vpop.permute.xlu0 %210
  %vm212 = vcmp.eq.s32.totalorder %v208, 1
  %vm213 = vcmp.eq.s32.totalorder %v211, 1
  %vm214 = vmand %vm204, %vm212
  %vm215 = vmand %vm205, %vm213
  %v216 = vsel %vm214, 1, 0
  %v217 = vsel %vm215, 1, 0
  %v218 = vcvt.s32.f32 %v216
  %v219 = vcvt.s32.f32 %v217
  %v220 = vadd.f32 %v196, %v218
  %v221 = vadd.f32 %v197, %v219
  %222 = vadd.xlane.f32.xlu0 %v220
  %v223 = vpop.xlane.xlu0 %222
  %224 = vadd.xlane.f32.xlu0 %v221
  %v225 = vpop.xlane.xlu0 %224
  %v226 = vld [vmem:[%s1] sm:$0xff]
  %v227 = vld [vmem:[%s1 + $0x8] sm:$0xff]
  %v228 = vld [vmem:[%s1 + $0x10] sm:$0xff]
  %v229 = vld [vmem:[%s1 + $0x18] sm:$0xff]
  %v230 = vld [vmem:[%s1 + $0x20] sm:$0xff]
  %v231 = vld [vmem:[%s1 + $0x28] sm:$0xff]
  %v232 = vld [vmem:[%s1 + $0x30] sm:$0xff]
  %v233 = vld [vmem:[%s1 + $0x38] sm:$0xff]
  %v234 = vld [vmem:[%s1 + $0x40] sm:$0xff]
  %v235 = vld [vmem:[%s1 + $0x48] sm:$0xff]
  %v236 = vld [vmem:[%s1 + $0x50] sm:$0xff]
  %v237 = vld [vmem:[%s1 + $0x58] sm:$0xff]
  %v238 = vld [vmem:[%s1 + $0x60] sm:$0xff]
  %v239 = vld [vmem:[%s1 + $0x68] sm:$0xff]
  %v240 = vld [vmem:[%s1 + $0x70] sm:$0xff]
  %v241 = vld [vmem:[%s1 + $0x78] sm:$0xff]
  %242 = vmatprep.subr.mxu0 0.0
  %243 = vmatpush1.msra.mxu0 %v241
  %244 = vmatprep.subr.mxu0 0.0
  %245 = vmatpush1.msra.mxu0 %v240
  %246 = vmatprep.subr.mxu0 0.0
  %247 = vmatpush1.msra.mxu0 %v239
  %248 = vmatprep.subr.mxu0 0.0
  %249 = vmatpush1.msra.mxu0 %v238
  %250 = vmatprep.subr.mxu0 0.0
  %251 = vmatpush1.msra.mxu0 %v237
  %252 = vmatprep.subr.mxu0 0.0
  %253 = vmatpush1.msra.mxu0 %v236
  %254 = vmatprep.subr.mxu0 0.0
  %255 = vmatpush1.msra.mxu0 %v235
  %256 = vmatprep.subr.mxu0 0.0
  %257 = vmatpush1.msra.mxu0 %v234
  %258 = vmatprep.subr.mxu0 0.0
  %259 = vmatpush1.msra.mxu0 %v233
  %260 = vmatprep.subr.mxu0 0.0
  %261 = vmatpush1.msra.mxu0 %v232
  %262 = vmatprep.subr.mxu0 0.0
  %263 = vmatpush1.msra.mxu0 %v231
  %264 = vmatprep.subr.mxu0 0.0
  %265 = vmatpush1.msra.mxu0 %v230
  %266 = vmatprep.subr.mxu0 0.0
  %267 = vmatpush1.msra.mxu0 %v229
  %268 = vmatprep.subr.mxu0 0.0
  %269 = vmatpush1.msra.mxu0 %v228
  %270 = vmatprep.subr.mxu0 0.0
  %271 = vmatpush1.msra.mxu0 %v227
  %272 = vmatprep.subr.mxu0 0.0
  %273 = vmatpush1.msra.mxu0 %v226
  %274 = vmatprep.subr.mxu0 0.0
  %275 = vmatpush2.msra.mxu0 0.0
  %276 = vmatprep.subr.mxu0 0.0
  %277 = vmatpush2.msra.mxu0 0.0
  %278 = vmatprep.subr.mxu0 0.0
  %279 = vmatpush2.msra.mxu0 0.0
  %280 = vmatprep.subr.mxu0 0.0
  %281 = vmatpush2.msra.mxu0 0.0
  %282 = vmatprep.subr.mxu0 0.0
  %283 = vmatpush2.msra.mxu0 0.0
  %284 = vmatprep.subr.mxu0 0.0
  %285 = vmatpush2.msra.mxu0 0.0
  %286 = vmatprep.subr.mxu0 0.0
  %287 = vmatpush2.msra.mxu0 0.0
  %288 = vmatprep.subr.mxu0 0.0
  %289 = vmatpush2.msra.mxu0 0.0
  %290 = vmatprep.subr.mxu0 0.0
  %291 = vmatpush2.msra.mxu0 0.0
  %292 = vmatprep.subr.mxu0 0.0
  %293 = vmatpush2.msra.mxu0 0.0
  %294 = vmatprep.subr.mxu0 0.0
  %295 = vmatpush2.msra.mxu0 0.0
  %296 = vmatprep.subr.mxu0 0.0
  %297 = vmatpush2.msra.mxu0 0.0
  %298 = vmatprep.subr.mxu0 0.0
  %299 = vmatpush2.msra.mxu0 0.0
  %300 = vmatprep.subr.mxu0 0.0
  %301 = vmatpush2.msra.mxu0 0.0
  %302 = vmatprep.subr.mxu0 0.0
  %303 = vmatpush2.msra.mxu0 0.0
  %304 = vmatprep.subr.mxu0 0.0
  %305 = vmatpush2.msra.mxu0 0.0
  %306 = vmatprep.mubr.f32.mxu0 0.0
  %307 = vmatmul.mubr.f32.gmra.mxu0 %v220
  %v308 = vpop.f32.mrf.mxu0
  %v309 = vadd.f32 0.0, %v308
  %v310 = vpop.f32.mrf.mxu0
  %311 = vmatprep.mubr.f32.mxu0 0.0
  %312 = vmatmul.mubr.f32.gmra.mxu0 %v221
  %v313 = vpop.f32.mrf.mxu0
  %v314 = vadd.f32 0.0, %v313
  %v315 = vpop.f32.mrf.mxu0
  %316 = vdwg.mxu0
  %v317 = vmax.f32 %v223, 1.0
  %v318 = vmax.f32 %v225, 1.0
  %v319 = vrcp.pop %v317
  %v320 = vmul.f32 %v309, %v319
  %v321 = vrcp.pop %v318
  %v322 = vmul.f32 %v314, %v321
  %v323 = vld [vmem:[%s2] sm:$0xff]
  %v324 = vld [vmem:[%s2 + $0x8] sm:$0xff]
  %v325 = vld [vmem:[%s2 + $0x10] sm:$0xff]
  %v326 = vld [vmem:[%s2 + $0x18] sm:$0xff]
  %v327 = vld [vmem:[%s2 + $0x20] sm:$0xff]
  %v328 = vld [vmem:[%s2 + $0x28] sm:$0xff]
  %v329 = vld [vmem:[%s2 + $0x30] sm:$0xff]
  %v330 = vld [vmem:[%s2 + $0x38] sm:$0xff]
  %v331 = vld [vmem:[%s2 + $0x40] sm:$0xff]
  %v332 = vld [vmem:[%s2 + $0x48] sm:$0xff]
  %v333 = vld [vmem:[%s2 + $0x50] sm:$0xff]
  %v334 = vld [vmem:[%s2 + $0x58] sm:$0xff]
  %v335 = vld [vmem:[%s2 + $0x60] sm:$0xff]
  %v336 = vld [vmem:[%s2 + $0x68] sm:$0xff]
  %v337 = vld [vmem:[%s2 + $0x70] sm:$0xff]
  %v338 = vld [vmem:[%s2 + $0x78] sm:$0xff]
  %v339 = vld [vmem:[%s3] sm:$0x1]
  %v341 = vlaneseq
  %v342 = vshrl.u32 %v341, 7
  %v343 = vsub.s32 0, %v342
  %v344 = vrot.slane %v339, %v343
  %346 = vmatprep.subr.mxu0 0.0
  %347 = vmatpush1.msra.mxu0 %v338
  %348 = vmatprep.subr.mxu0 0.0
  %349 = vmatpush1.msra.mxu0 %v337
  %350 = vmatprep.subr.mxu0 0.0
  %351 = vmatpush1.msra.mxu0 %v336
  %352 = vmatprep.subr.mxu0 0.0
  %353 = vmatpush1.msra.mxu0 %v335
  %354 = vmatprep.subr.mxu0 0.0
  %355 = vmatpush1.msra.mxu0 %v334
  %356 = vmatprep.subr.mxu0 0.0
  %357 = vmatpush1.msra.mxu0 %v333
  %358 = vmatprep.subr.mxu0 0.0
  %359 = vmatpush1.msra.mxu0 %v332
  %360 = vmatprep.subr.mxu0 0.0
  %361 = vmatpush1.msra.mxu0 %v331
  %362 = vmatprep.subr.mxu0 0.0
  %363 = vmatpush1.msra.mxu0 %v330
  %364 = vmatprep.subr.mxu0 0.0
  %365 = vmatpush1.msra.mxu0 %v329
  %366 = vmatprep.subr.mxu0 0.0
  %367 = vmatpush1.msra.mxu0 %v328
  %368 = vmatprep.subr.mxu0 0.0
  %369 = vmatpush1.msra.mxu0 %v327
  %370 = vmatprep.subr.mxu0 0.0
  %371 = vmatpush1.msra.mxu0 %v326
  %372 = vmatprep.subr.mxu0 0.0
  %373 = vmatpush1.msra.mxu0 %v325
  %374 = vmatprep.subr.mxu0 0.0
  %375 = vmatpush1.msra.mxu0 %v324
  %376 = vmatprep.subr.mxu0 0.0
  %377 = vmatpush1.msra.mxu0 %v323
  %378 = vmatprep.subr.mxu0 0.0
  %379 = vmatpush2.msra.mxu0 0.0
  %380 = vmatprep.subr.mxu0 0.0
  %381 = vmatpush2.msra.mxu0 0.0
  %382 = vmatprep.subr.mxu0 0.0
  %383 = vmatpush2.msra.mxu0 0.0
  %384 = vmatprep.subr.mxu0 0.0
  %385 = vmatpush2.msra.mxu0 0.0
  %386 = vmatprep.subr.mxu0 0.0
  %387 = vmatpush2.msra.mxu0 0.0
  %388 = vmatprep.subr.mxu0 0.0
  %389 = vmatpush2.msra.mxu0 0.0
  %390 = vmatprep.subr.mxu0 0.0
  %391 = vmatpush2.msra.mxu0 0.0
  %392 = vmatprep.subr.mxu0 0.0
  %393 = vmatpush2.msra.mxu0 0.0
  %394 = vmatprep.subr.mxu0 0.0
  %395 = vmatpush2.msra.mxu0 0.0
  %396 = vmatprep.subr.mxu0 0.0
  %397 = vmatpush2.msra.mxu0 0.0
  %398 = vmatprep.subr.mxu0 0.0
  %399 = vmatpush2.msra.mxu0 0.0
  %400 = vmatprep.subr.mxu0 0.0
  %401 = vmatpush2.msra.mxu0 0.0
  %402 = vmatprep.subr.mxu0 0.0
  %403 = vmatpush2.msra.mxu0 0.0
  %404 = vmatprep.subr.mxu0 0.0
  %405 = vmatpush2.msra.mxu0 0.0
  %406 = vmatprep.subr.mxu0 0.0
  %407 = vmatpush2.msra.mxu0 0.0
  %408 = vmatprep.subr.mxu0 0.0
  %409 = vmatpush2.msra.mxu0 0.0
  %410 = vmatprep.mubr.f32.mxu0 0.0
  %411 = vmatmul.mubr.f32.gmra.mxu0 %v320
  %v412 = vpop.f32.mrf.mxu0
  %v413 = vadd.f32 %v344, %v412
  %v414 = vpop.f32.mrf.mxu0
  %415 = vmatprep.mubr.f32.mxu0 0.0
  %416 = vmatmul.mubr.f32.gmra.mxu0 %v322
  %v417 = vpop.f32.mrf.mxu0
  %v418 = vadd.f32 %v344, %v417
  %v419 = vpop.f32.mrf.mxu0
  %420 = vdwg.mxu0
  %v421 = vxor.u32 %v413, 2147483648
  %v422 = vxor.u32 %v418, 2147483648
  %v423 = vmul.f32 %v421, 1.442695
  %v424 = vpow.pop %v423
  %v425 = vmul.f32 %v422, 1.442695
  %v426 = vpow.pop %v425
  %v427 = vadd.f32 %v424, 1.0
  %v428 = vadd.f32 %v426, 1.0
  %v429 = vrcp.pop %v427
  %v430 = vmul.f32 1.0, %v429
  %v431 = vrcp.pop %v428
  %v432 = vmul.f32 1.0, %v431
  %433 = vst [vmem:[%s5] sm:$0xff] %v430
  %434 = vst [vmem:[%s5 + $0x8] sm:$0xff] %v432
  %v435 = vld [vmem:[%s4] sm:$0xff]
  %v436 = vld [vmem:[%s4 + $0x8] sm:$0xff]
  %v437 = vadd.f32 %v430, 1e-10
  %v438 = vadd.f32 %v432, 1e-10
  %v439 = vlog2.pop %v437
  %v440 = vmul.f32 %v439, 0.6931472
  %v441 = vlog2.pop %v438
  %v442 = vmul.f32 %v441, 0.6931472
  %v443 = vmul.f32 %v440, %v435
  %v444 = vmul.f32 %v442, %v436
  %v445 = vsub.f32 1.0, %v430
  %v446 = vsub.f32 1.0, %v432
  %v447 = vadd.f32 %v445, 1e-10
  %v448 = vadd.f32 %v446, 1e-10
  %v449 = vlog2.pop %v447
  %v450 = vmul.f32 %v449, 0.6931472
  %v451 = vlog2.pop %v448
  %v452 = vmul.f32 %v451, 0.6931472
  %v453 = vsub.f32 1.0, %v435
  %v454 = vsub.f32 1.0, %v436
  %v455 = vmul.f32 %v450, %v453
  %v456 = vmul.f32 %v452, %v454
  %v457 = vadd.f32 %v443, %v455
  %v458 = vadd.f32 %v444, %v456
  %vm459 = vcmask 7168
  %460 = vst.msk [vmem:[%s6] sm:$0xff] %vm459, %v457
  %461 = vst.msk [vmem:[%s6 + $0x8] sm:$0xff] %vm459, %v458
  // Predicated region
  $region22: #{model_forward.1} parent=0 // pred_check
    _
  $region23: #{model_forward.1} parent=0 // pred_check_branch
    %463 = sbr.rel (0) target = $region25
  $region24: #{model_forward.1} parent=0 // pred_region
    _
  $region25: #{model_forward.1} parent=0 // pred_fallthru
    _
  // Predicated region
  $region26: #{model_forward.1} parent=0 // pred_check
    _
  $region27: #{model_forward.1} parent=0 // pred_check_branch
    %465 = sbr.rel (0) target = $region29
  $region28: #{model_forward.1} parent=0 // pred_region
    _
  $region29: #{model_forward.1} parent=0 // pred_fallthru
    _
  // Predicated region
  $region30: #{model_forward.1} parent=0 // pred_check
    _
  $region31: #{model_forward.1} parent=0 // pred_check_branch
    %467 = sbr.rel (0) target = $region33
  $region32: #{model_forward.1} parent=0 // pred_region
    _
  $region33: #{model_forward.1} parent=0 // pred_fallthru
    _
  // Predicated region
  $region34: #{model_forward.1} parent=0 // pred_check
    _
  $region35: #{model_forward.1} parent=0 // pred_check_branch
    %469 = sbr.rel (0) target = $region37
  $region36: #{model_forward.1} parent=0 // pred_region
    _
  $region37: #{model_forward.1} parent=0 // pred_fallthru
    _

</llo_original>
